<compile_context>
chip_gen: v7x
topology: tpu7x:2x2x1
jax: 0.10.0
libtpu: 0.0.40
codegen_flags: <defaults>
</compile_context>

<pallas_src>
import functools

import jax
import jax.numpy as jnp
from jax import lax
from jax.experimental import pallas as pl
from jax.experimental.pallas import tpu as pltpu


def lstm_kernel(x_ref, w_ih_ref, w_hh_ref, b_ref, w_out_ref, b_out_ref,
                out_ref, xw_ref, h_seq_ref, *, T, Bp):
    """Fused LSTM forward: input projection + T-step recurrence + output Linear.

    x_ref     : (T*Bp, I)   flattened, batch-padded input sequence
    w_ih_ref  : (I, 4H)     input->gates weights, gate columns reordered [i,f,o,g]
    w_hh_ref  : (H, 4H)     hidden->gates weights, same reorder
    b_ref     : (1, 4H)     b_ih + b_hh, same reorder
    w_out_ref : (H, I)      output Linear weight (transposed)
    b_out_ref : (1, I)      output Linear bias
    out_ref   : (T*Bp, I)   output (padded batch rows included)
    xw_ref    : (T*Bp, 4H)  VMEM scratch: staged input projection
    h_seq_ref : (T*Bp, H)   VMEM scratch: staged hidden states
    """
    H = w_hh_ref.shape[0]

    # (1) Hoisted, time-independent input projection: one batched matmul, staged
    #     into explicit VMEM scratch so vreg pressure stays flat inside the
    #     unrolled recurrence.
    xw_ref[...] = (jnp.dot(x_ref[...], w_ih_ref[...],
                           preferred_element_type=jnp.float32)
                   + b_ref[...])                                  # (T*Bp, 4H)

    w_hh = w_hh_ref[...]                                          # load once

    h = jnp.zeros((Bp, H), jnp.float32)
    c = jnp.zeros((Bp, H), jnp.float32)

    # (2) Recurrence, fully unrolled (static T=8).  Only h @ W_hh^T is serial.
    #     NOTE: once T grows beyond ~16-32, switch to
    #     lax.fori_loop(..., unroll=4..8) with pl.ds + pl.multiple_of offsets.
    for t in range(T):
        row = t * Bp  # static offset, multiple of 8 -> aligned sublane-group access

        gates = xw_ref[row:row + Bp, :] + jnp.dot(
            h, w_hh, preferred_element_type=jnp.float32)          # (Bp, 4H)

        # Gate order after wrapper reorder: [i, f, o, g].
        # sigmoid(x) = 0.5*tanh(0.5*x) + 0.5 -> a single EUP push over the full
        # (Bp, 4H) gates vreg covers i, f, o.  The g lane window (3H:4H) also
        # gets the sigmoid applied and is simply discarded -- it shares the
        # vreg; do NOT "fix" this into per-gate slices.
        sig = 0.5 * jnp.tanh(0.5 * gates) + 0.5
        i_g = sig[:, 0 * H:1 * H]
        f_g = sig[:, 1 * H:2 * H]
        o_g = sig[:, 2 * H:3 * H]
        g_g = jnp.tanh(gates[:, 3 * H:4 * H])

        c = f_g * c + i_g * g_g
        h = o_g * jnp.tanh(c)

        # Stage hidden state for the hoisted output projection (aligned store).
        h_seq_ref[row:row + Bp, :] = h

    # (3) Hoisted output Linear: one matmul + one bulk store.
    out_ref[...] = (jnp.dot(h_seq_ref[...], w_out_ref[...],
                            preferred_element_type=jnp.float32)
                    + b_out_ref[...]).astype(out_ref.dtype)


def _reorder_gates(m):
    """PyTorch gate order [i, f, g, o] (stacked along axis 0) -> [i, f, o, g]."""
    i, f, g, o = jnp.split(m, 4, axis=0)
    return jnp.concatenate([i, f, o, g], axis=0)


@jax.jit
def lstm_forward(x, w_ih, w_hh, b_ih, b_hh, w_out, b_out):
    """x: (T, B, I) f32. Weights in PyTorch layout. Returns (T, B, I)."""
    T, B, I = x.shape
    H = w_hh.shape[1]

    # Pad batch to one full sublane group (multiple of 8) so every per-step
    # slice / store inside the recurrence is sublane-aligned.
    Bp = max(8, ((B + 7) // 8) * 8)

    # Kernel-friendly layouts: transpose + reorder gate blocks to [i, f, o, g].
    w_ih_r = _reorder_gates(w_ih).T                 # (I, 4H)
    w_hh_r = _reorder_gates(w_hh).T                 # (H, 4H)
    b_r = _reorder_gates(b_ih + b_hh).reshape(1, 4 * H)
    w_out_t = w_out.T                               # (H, I)
    b_out2 = b_out.reshape(1, I)

    x_pad = jnp.pad(x, ((0, 0), (0, Bp - B), (0, 0)))   # (T, Bp, I)
    x2d = x_pad.reshape(T * Bp, I)

    kernel = functools.partial(lstm_kernel, T=T, Bp=Bp)
    vmem = pl.BlockSpec(memory_space=pltpu.MemorySpace.VMEM)

    out2d = pl.pallas_call(
        kernel,
        out_shape=jax.ShapeDtypeStruct((T * Bp, I), x.dtype),
        in_specs=[vmem, vmem, vmem, vmem, vmem, vmem],   # whole arrays, VMEM-resident
        out_specs=vmem,
        scratch_shapes=[
            pltpu.VMEM((T * Bp, 4 * H), jnp.float32),    # staged input projection
            pltpu.VMEM((T * Bp, H), jnp.float32),        # staged hidden states
        ],
        compiler_params=pltpu.CompilerParams(
            vmem_limit_bytes=32 * 1024 * 1024,   # explicit; safe on v5e/v6e/v7x
        ),
    )(x2d, w_ih_r, w_hh_r, b_r, w_out_t, b_out2)

    # NOTE: if batch grows beyond ~8, add a batch-tile "parallel" grid axis
    # (per-tile h/c/h_seq scratch, replicated weights) so both v7x TensorCores
    # run independent batch shards.  If T grows large, chunk the time axis so
    # x/xw/h_seq/out footprints stay bounded on v7x's 64 MiB VMEM.
    return out2d.reshape(T, Bp, I)[:, :B, :]


def lstm_reference(x, w_ih, w_hh, b_ih, b_hh, w_out, b_out):
    """Pure-JAX reference (lax.scan) in PyTorch gate order / layout."""
    T, B, I = x.shape
    H = w_hh.shape[1]
    b = b_ih + b_hh

    def step(carry, x_t):
        h, c = carry
        gates = x_t @ w_ih.T + h @ w_hh.T + b
        i_g = jax.nn.sigmoid(gates[:, 0 * H:1 * H])
        f_g = jax.nn.sigmoid(gates[:, 1 * H:2 * H])
        g_g = jnp.tanh(gates[:, 2 * H:3 * H])
        o_g = jax.nn.sigmoid(gates[:, 3 * H:4 * H])
        c = f_g * c + i_g * g_g
        h = o_g * jnp.tanh(c)
        return (h, c), h @ w_out.T + b_out

    init = (jnp.zeros((B, H), jnp.float32), jnp.zeros((B, H), jnp.float32))
    _, ys = lax.scan(step, init, x)
    return ys


# TODO(synk): the predict_timesteps>0 autoregressive generation loop (re-applying
# the recurrence with input_t = output_t) is not implemented in the kernel.

if __name__ == "__main__":
    # Small shapes implied by the module: seq=8, batch=2, input_size=4, hidden=32.
    T, B, I, H = 8, 2, 4, 32

    key = jax.random.PRNGKey(0)
    k = jax.random.split(key, 7)
    bound = 1.0 / jnp.sqrt(jnp.float32(H))   # PyTorch default uniform(-1/sqrt(H), 1/sqrt(H))

    # Deterministic synthetic parameters in PyTorch layout / gate order (i,f,g,o).
    w_ih = jax.random.uniform(k[0], (4 * H, I), jnp.float32, -bound, bound)   # weight_ih_l0
    w_hh = jax.random.uniform(k[1], (4 * H, H), jnp.float32, -bound, bound)   # weight_hh_l0
    b_ih = jax.random.uniform(k[2], (4 * H,), jnp.float32, -bound, bound)
    b_hh = jax.random.uniform(k[3], (4 * H,), jnp.float32, -bound, bound)
    w_out = jax.random.uniform(k[4], (I, H), jnp.float32, -bound, bound)      # linear_out.weight
    b_out = jax.random.uniform(k[5], (I,), jnp.float32, -bound, bound)

    x = jax.random.normal(k[6], (T, B, I), jnp.float32)

    out = lstm_forward(x, w_ih, w_hh, b_ih, b_hh, w_out, b_out)
    out = jax.block_until_ready(out)

    ref = lstm_reference(x, w_ih, w_hh, b_ih, b_hh, w_out, b_out)
    assert out.shape == (T, B, I)
    assert jnp.allclose(out, ref, atol=1e-5, rtol=1e-5), "mismatch vs JAX reference"

    print("KERNEL_OK")
</pallas_src>

<mosaic_0001>
module attributes {stable_mosaic.version = 11 : i64} {
  func.func @lstm_kernel(%arg0: memref<64x4xf32, #tpu.memory_space<vmem>>, %arg1: memref<4x128xf32, #tpu.memory_space<vmem>>, %arg2: memref<32x128xf32, #tpu.memory_space<vmem>>, %arg3: memref<1x128xf32, #tpu.memory_space<vmem>>, %arg4: memref<32x4xf32, #tpu.memory_space<vmem>>, %arg5: memref<1x4xf32, #tpu.memory_space<vmem>>, %arg6: memref<64x4xf32, #tpu.memory_space<vmem>>, %arg7: memref<64x128xf32, #tpu.memory_space<vmem>>, %arg8: memref<64x32xf32, #tpu.memory_space<vmem>>) attributes {dimension_semantics = [], scalar_prefetch = 0 : i64, scratch_operands = 2 : i64, tpu.core_type = #tpu.core_type<tc>} {
    %c0 = arith.constant 0 : index
    %c0_0 = arith.constant 0 : index
    %0 = vector.load %arg0[%c0, %c0_0] : memref<64x4xf32, #tpu.memory_space<vmem>>, vector<64x4xf32>
    %c0_1 = arith.constant 0 : index
    %c0_2 = arith.constant 0 : index
    %1 = vector.load %arg1[%c0_1, %c0_2] : memref<4x128xf32, #tpu.memory_space<vmem>>, vector<4x128xf32>
    %cst = arith.constant dense<0.000000e+00> : vector<64x128xf32>
    %2 = tpu.matmul %0, %1, %cst {dimension_numbers = #tpu.dot_dimension_numbers<[1], [0], [0], [1], [0, 0, 1, 1], [], []>} : vector<64x4xf32>, vector<4x128xf32>, vector<64x128xf32> -> vector<64x128xf32>
    %c0_3 = arith.constant 0 : index
    %c0_4 = arith.constant 0 : index
    %3 = vector.load %arg3[%c0_3, %c0_4] : memref<1x128xf32, #tpu.memory_space<vmem>>, vector<1x128xf32>
    %4 = vector.broadcast %3 : vector<1x128xf32> to vector<64x128xf32>
    %5 = arith.addf %2, %4 : vector<64x128xf32>
    %c0_5 = arith.constant 0 : index
    %c0_6 = arith.constant 0 : index
    %6 = vector.load %arg7[%c0_5, %c0_6] : memref<64x128xf32, #tpu.memory_space<vmem>>, vector<64x128xf32>
    tpu.vector_store %arg7[%c0_5, %c0_6], %5 {strides = array<i32>} : memref<64x128xf32, #tpu.memory_space<vmem>>, vector<64x128xf32>,
    %c0_7 = arith.constant 0 : index
    %c0_8 = arith.constant 0 : index
    %7 = vector.load %arg2[%c0_7, %c0_8] : memref<32x128xf32, #tpu.memory_space<vmem>>, vector<32x128xf32>
    %cst_9 = arith.constant 0.000000e+00 : f32
    %8 = vector.broadcast %cst_9 : f32 to vector<8x32xf32>
    %cst_10 = arith.constant 0.000000e+00 : f32
    %9 = vector.broadcast %cst_10 : f32 to vector<8x32xf32>
    %c0_11 = arith.constant 0 : index
    %c0_12 = arith.constant 0 : index
    %10 = vector.load %arg7[%c0_11, %c0_12] : memref<64x128xf32, #tpu.memory_space<vmem>>, vector<8x128xf32>
    %cst_13 = arith.constant dense<0.000000e+00> : vector<8x128xf32>
    %11 = tpu.matmul %8, %7, %cst_13 {dimension_numbers = #tpu.dot_dimension_numbers<[1], [0], [0], [1], [0, 0, 1, 1], [], []>} : vector<8x32xf32>, vector<32x128xf32>, vector<8x128xf32> -> vector<8x128xf32>
    %12 = arith.addf %10, %11 : vector<8x128xf32>
    %cst_14 = arith.constant 5.000000e-01 : f32
    %13 = vector.broadcast %cst_14 : f32 to vector<8x128xf32>
    %14 = arith.mulf %13, %12 : vector<8x128xf32>
    %15 = math.tanh %14 : vector<8x128xf32>
    %cst_15 = arith.constant 5.000000e-01 : f32
    %16 = vector.broadcast %cst_15 : f32 to vector<8x128xf32>
    %17 = arith.mulf %16, %15 : vector<8x128xf32>
    %cst_16 = arith.constant 5.000000e-01 : f32
    %18 = vector.broadcast %cst_16 : f32 to vector<8x128xf32>
    %19 = arith.addf %17, %18 : vector<8x128xf32>
    %20 = vector.extract_strided_slice %19 {offsets = [0, 0], sizes = [8, 32], strides = [1, 1]} : vector<8x128xf32> to vector<8x32xf32>
    %21 = vector.extract_strided_slice %19 {offsets = [0, 32], sizes = [8, 32], strides = [1, 1]} : vector<8x128xf32> to vector<8x32xf32>
    %22 = vector.extract_strided_slice %19 {offsets = [0, 64], sizes = [8, 32], strides = [1, 1]} : vector<8x128xf32> to vector<8x32xf32>
    %23 = vector.extract_strided_slice %12 {offsets = [0, 96], sizes = [8, 32], strides = [1, 1]} : vector<8x128xf32> to vector<8x32xf32>
    %24 = math.tanh %23 : vector<8x32xf32>
    %25 = arith.mulf %21, %9 : vector<8x32xf32>
    %26 = arith.mulf %20, %24 : vector<8x32xf32>
    %27 = arith.addf %25, %26 : vector<8x32xf32>
    %28 = math.tanh %27 : vector<8x32xf32>
    %29 = arith.mulf %22, %28 : vector<8x32xf32>
    %c0_17 = arith.constant 0 : index
    %c0_18 = arith.constant 0 : index
    %30 = vector.load %arg8[%c0_17, %c0_18] : memref<64x32xf32, #tpu.memory_space<vmem>>, vector<8x32xf32>
    tpu.vector_store %arg8[%c0_17, %c0_18], %29 {strides = array<i32>} : memref<64x32xf32, #tpu.memory_space<vmem>>, vector<8x32xf32>,
    %c8 = arith.constant 8 : index
    %c0_19 = arith.constant 0 : index
    %31 = vector.load %arg7[%c8, %c0_19] : memref<64x128xf32, #tpu.memory_space<vmem>>, vector<8x128xf32>
    %cst_20 = arith.constant dense<0.000000e+00> : vector<8x128xf32>
    %32 = tpu.matmul %29, %7, %cst_20 {dimension_numbers = #tpu.dot_dimension_numbers<[1], [0], [0], [1], [0, 0, 1, 1], [], []>} : vector<8x32xf32>, vector<32x128xf32>, vector<8x128xf32> -> vector<8x128xf32>
    %33 = arith.addf %31, %32 : vector<8x128xf32>
    %cst_21 = arith.constant 5.000000e-01 : f32
    %34 = vector.broadcast %cst_21 : f32 to vector<8x128xf32>
    %35 = arith.mulf %34, %33 : vector<8x128xf32>
    %36 = math.tanh %35 : vector<8x128xf32>
    %cst_22 = arith.constant 5.000000e-01 : f32
    %37 = vector.broadcast %cst_22 : f32 to vector<8x128xf32>
    %38 = arith.mulf %37, %36 : vector<8x128xf32>
    %cst_23 = arith.constant 5.000000e-01 : f32
    %39 = vector.broadcast %cst_23 : f32 to vector<8x128xf32>
    %40 = arith.addf %38, %39 : vector<8x128xf32>
    %41 = vector.extract_strided_slice %40 {offsets = [0, 0], sizes = [8, 32], strides = [1, 1]} : vector<8x128xf32> to vector<8x32xf32>
    %42 = vector.extract_strided_slice %40 {offsets = [0, 32], sizes = [8, 32], strides = [1, 1]} : vector<8x128xf32> to vector<8x32xf32>
    %43 = vector.extract_strided_slice %40 {offsets = [0, 64], sizes = [8, 32], strides = [1, 1]} : vector<8x128xf32> to vector<8x32xf32>
    %44 = vector.extract_strided_slice %33 {offsets = [0, 96], sizes = [8, 32], strides = [1, 1]} : vector<8x128xf32> to vector<8x32xf32>
    %45 = math.tanh %44 : vector<8x32xf32>
    %46 = arith.mulf %42, %27 : vector<8x32xf32>
    %47 = arith.mulf %41, %45 : vector<8x32xf32>
    %48 = arith.addf %46, %47 : vector<8x32xf32>
    %49 = math.tanh %48 : vector<8x32xf32>
    %50 = arith.mulf %43, %49 : vector<8x32xf32>
    %c8_24 = arith.constant 8 : index
    %c0_25 = arith.constant 0 : index
    %51 = vector.load %arg8[%c8_24, %c0_25] : memref<64x32xf32, #tpu.memory_space<vmem>>, vector<8x32xf32>
    tpu.vector_store %arg8[%c8_24, %c0_25], %50 {strides = array<i32>} : memref<64x32xf32, #tpu.memory_space<vmem>>, vector<8x32xf32>,
    %c16 = arith.constant 16 : index
    %c0_26 = arith.constant 0 : index
    %52 = vector.load %arg7[%c16, %c0_26] : memref<64x128xf32, #tpu.memory_space<vmem>>, vector<8x128xf32>
    %cst_27 = arith.constant dense<0.000000e+00> : vector<8x128xf32>
    %53 = tpu.matmul %50, %7, %cst_27 {dimension_numbers = #tpu.dot_dimension_numbers<[1], [0], [0], [1], [0, 0, 1, 1], [], []>} : vector<8x32xf32>, vector<32x128xf32>, vector<8x128xf32> -> vector<8x128xf32>
    %54 = arith.addf %52, %53 : vector<8x128xf32>
    %cst_28 = arith.constant 5.000000e-01 : f32
    %55 = vector.broadcast %cst_28 : f32 to vector<8x128xf32>
    %56 = arith.mulf %55, %54 : vector<8x128xf32>
    %57 = math.tanh %56 : vector<8x128xf32>
    %cst_29 = arith.constant 5.000000e-01 : f32
    %58 = vector.broadcast %cst_29 : f32 to vector<8x128xf32>
    %59 = arith.mulf %58, %57 : vector<8x128xf32>
    %cst_30 = arith.constant 5.000000e-01 : f32
    %60 = vector.broadcast %cst_30 : f32 to vector<8x128xf32>
    %61 = arith.addf %59, %60 : vector<8x128xf32>
    %62 = vector.extract_strided_slice %61 {offsets = [0, 0], sizes = [8, 32], strides = [1, 1]} : vector<8x128xf32> to vector<8x32xf32>
    %63 = vector.extract_strided_slice %61 {offsets = [0, 32], sizes = [8, 32], strides = [1, 1]} : vector<8x128xf32> to vector<8x32xf32>
    %64 = vector.extract_strided_slice %61 {offsets = [0, 64], sizes = [8, 32], strides = [1, 1]} : vector<8x128xf32> to vector<8x32xf32>
    %65 = vector.extract_strided_slice %54 {offsets = [0, 96], sizes = [8, 32], strides = [1, 1]} : vector<8x128xf32> to vector<8x32xf32>
    %66 = math.tanh %65 : vector<8x32xf32>
    %67 = arith.mulf %63, %48 : vector<8x32xf32>
    %68 = arith.mulf %62, %66 : vector<8x32xf32>
    %69 = arith.addf %67, %68 : vector<8x32xf32>
    %70 = math.tanh %69 : vector<8x32xf32>
    %71 = arith.mulf %64, %70 : vector<8x32xf32>
    %c16_31 = arith.constant 16 : index
    %c0_32 = arith.constant 0 : index
    %72 = vector.load %arg8[%c16_31, %c0_32] : memref<64x32xf32, #tpu.memory_space<vmem>>, vector<8x32xf32>
    tpu.vector_store %arg8[%c16_31, %c0_32], %71 {strides = array<i32>} : memref<64x32xf32, #tpu.memory_space<vmem>>, vector<8x32xf32>,
    %c24 = arith.constant 24 : index
    %c0_33 = arith.constant 0 : index
    %73 = vector.load %arg7[%c24, %c0_33] : memref<64x128xf32, #tpu.memory_space<vmem>>, vector<8x128xf32>
    %cst_34 = arith.constant dense<0.000000e+00> : vector<8x128xf32>
    %74 = tpu.matmul %71, %7, %cst_34 {dimension_numbers = #tpu.dot_dimension_numbers<[1], [0], [0], [1], [0, 0, 1, 1], [], []>} : vector<8x32xf32>, vector<32x128xf32>, vector<8x128xf32> -> vector<8x128xf32>
    %75 = arith.addf %73, %74 : vector<8x128xf32>
    %cst_35 = arith.constant 5.000000e-01 : f32
    %76 = vector.broadcast %cst_35 : f32 to vector<8x128xf32>
    %77 = arith.mulf %76, %75 : vector<8x128xf32>
    %78 = math.tanh %77 : vector<8x128xf32>
    %cst_36 = arith.constant 5.000000e-01 : f32
    %79 = vector.broadcast %cst_36 : f32 to vector<8x128xf32>
    %80 = arith.mulf %79, %78 : vector<8x128xf32>
    %cst_37 = arith.constant 5.000000e-01 : f32
    %81 = vector.broadcast %cst_37 : f32 to vector<8x128xf32>
    %82 = arith.addf %80, %81 : vector<8x128xf32>
    %83 = vector.extract_strided_slice %82 {offsets = [0, 0], sizes = [8, 32], strides = [1, 1]} : vector<8x128xf32> to vector<8x32xf32>
    %84 = vector.extract_strided_slice %82 {offsets = [0, 32], sizes = [8, 32], strides = [1, 1]} : vector<8x128xf32> to vector<8x32xf32>
    %85 = vector.extract_strided_slice %82 {offsets = [0, 64], sizes = [8, 32], strides = [1, 1]} : vector<8x128xf32> to vector<8x32xf32>
    %86 = vector.extract_strided_slice %75 {offsets = [0, 96], sizes = [8, 32], strides = [1, 1]} : vector<8x128xf32> to vector<8x32xf32>
    %87 = math.tanh %86 : vector<8x32xf32>
    %88 = arith.mulf %84, %69 : vector<8x32xf32>
    %89 = arith.mulf %83, %87 : vector<8x32xf32>
    %90 = arith.addf %88, %89 : vector<8x32xf32>
    %91 = math.tanh %90 : vector<8x32xf32>
    %92 = arith.mulf %85, %91 : vector<8x32xf32>
    %c24_38 = arith.constant 24 : index
    %c0_39 = arith.constant 0 : index
    %93 = vector.load %arg8[%c24_38, %c0_39] : memref<64x32xf32, #tpu.memory_space<vmem>>, vector<8x32xf32>
    tpu.vector_store %arg8[%c24_38, %c0_39], %92 {strides = array<i32>} : memref<64x32xf32, #tpu.memory_space<vmem>>, vector<8x32xf32>,
    %c32 = arith.constant 32 : index
    %c0_40 = arith.constant 0 : index
    %94 = vector.load %arg7[%c32, %c0_40] : memref<64x128xf32, #tpu.memory_space<vmem>>, vector<8x128xf32>
    %cst_41 = arith.constant dense<0.000000e+00> : vector<8x128xf32>
    %95 = tpu.matmul %92, %7, %cst_41 {dimension_numbers = #tpu.dot_dimension_numbers<[1], [0], [0], [1], [0, 0, 1, 1], [], []>} : vector<8x32xf32>, vector<32x128xf32>, vector<8x128xf32> -> vector<8x128xf32>
    %96 = arith.addf %94, %95 : vector<8x128xf32>
    %cst_42 = arith.constant 5.000000e-01 : f32
    %97 = vector.broadcast %cst_42 : f32 to vector<8x128xf32>
    %98 = arith.mulf %97, %96 : vector<8x128xf32>
    %99 = math.tanh %98 : vector<8x128xf32>
    %cst_43 = arith.constant 5.000000e-01 : f32
    %100 = vector.broadcast %cst_43 : f32 to vector<8x128xf32>
    %101 = arith.mulf %100, %99 : vector<8x128xf32>
    %cst_44 = arith.constant 5.000000e-01 : f32
    %102 = vector.broadcast %cst_44 : f32 to vector<8x128xf32>
    %103 = arith.addf %101, %102 : vector<8x128xf32>
    %104 = vector.extract_strided_slice %103 {offsets = [0, 0], sizes = [8, 32], strides = [1, 1]} : vector<8x128xf32> to vector<8x32xf32>
    %105 = vector.extract_strided_slice %103 {offsets = [0, 32], sizes = [8, 32], strides = [1, 1]} : vector<8x128xf32> to vector<8x32xf32>
    %106 = vector.extract_strided_slice %103 {offsets = [0, 64], sizes = [8, 32], strides = [1, 1]} : vector<8x128xf32> to vector<8x32xf32>
    %107 = vector.extract_strided_slice %96 {offsets = [0, 96], sizes = [8, 32], strides = [1, 1]} : vector<8x128xf32> to vector<8x32xf32>
    %108 = math.tanh %107 : vector<8x32xf32>
    %109 = arith.mulf %105, %90 : vector<8x32xf32>
    %110 = arith.mulf %104, %108 : vector<8x32xf32>
    %111 = arith.addf %109, %110 : vector<8x32xf32>
    %112 = math.tanh %111 : vector<8x32xf32>
    %113 = arith.mulf %106, %112 : vector<8x32xf32>
    %c32_45 = arith.constant 32 : index
    %c0_46 = arith.constant 0 : index
    %114 = vector.load %arg8[%c32_45, %c0_46] : memref<64x32xf32, #tpu.memory_space<vmem>>, vector<8x32xf32>
    tpu.vector_store %arg8[%c32_45, %c0_46], %113 {strides = array<i32>} : memref<64x32xf32, #tpu.memory_space<vmem>>, vector<8x32xf32>,
    %c40 = arith.constant 40 : index
    %c0_47 = arith.constant 0 : index
    %115 = vector.load %arg7[%c40, %c0_47] : memref<64x128xf32, #tpu.memory_space<vmem>>, vector<8x128xf32>
    %cst_48 = arith.constant dense<0.000000e+00> : vector<8x128xf32>
    %116 = tpu.matmul %113, %7, %cst_48 {dimension_numbers = #tpu.dot_dimension_numbers<[1], [0], [0], [1], [0, 0, 1, 1], [], []>} : vector<8x32xf32>, vector<32x128xf32>, vector<8x128xf32> -> vector<8x128xf32>
    %117 = arith.addf %115, %116 : vector<8x128xf32>
    %cst_49 = arith.constant 5.000000e-01 : f32
    %118 = vector.broadcast %cst_49 : f32 to vector<8x128xf32>
    %119 = arith.mulf %118, %117 : vector<8x128xf32>
    %120 = math.tanh %119 : vector<8x128xf32>
    %cst_50 = arith.constant 5.000000e-01 : f32
    %121 = vector.broadcast %cst_50 : f32 to vector<8x128xf32>
    %122 = arith.mulf %121, %120 : vector<8x128xf32>
    %cst_51 = arith.constant 5.000000e-01 : f32
    %123 = vector.broadcast %cst_51 : f32 to vector<8x128xf32>
    %124 = arith.addf %122, %123 : vector<8x128xf32>
    %125 = vector.extract_strided_slice %124 {offsets = [0, 0], sizes = [8, 32], strides = [1, 1]} : vector<8x128xf32> to vector<8x32xf32>
    %126 = vector.extract_strided_slice %124 {offsets = [0, 32], sizes = [8, 32], strides = [1, 1]} : vector<8x128xf32> to vector<8x32xf32>
    %127 = vector.extract_strided_slice %124 {offsets = [0, 64], sizes = [8, 32], strides = [1, 1]} : vector<8x128xf32> to vector<8x32xf32>
    %128 = vector.extract_strided_slice %117 {offsets = [0, 96], sizes = [8, 32], strides = [1, 1]} : vector<8x128xf32> to vector<8x32xf32>
    %129 = math.tanh %128 : vector<8x32xf32>
    %130 = arith.mulf %126, %111 : vector<8x32xf32>
    %131 = arith.mulf %125, %129 : vector<8x32xf32>
    %132 = arith.addf %130, %131 : vector<8x32xf32>
    %133 = math.tanh %132 : vector<8x32xf32>
    %134 = arith.mulf %127, %133 : vector<8x32xf32>
    %c40_52 = arith.constant 40 : index
    %c0_53 = arith.constant 0 : index
    %135 = vector.load %arg8[%c40_52, %c0_53] : memref<64x32xf32, #tpu.memory_space<vmem>>, vector<8x32xf32>
    tpu.vector_store %arg8[%c40_52, %c0_53], %134 {strides = array<i32>} : memref<64x32xf32, #tpu.memory_space<vmem>>, vector<8x32xf32>,
    %c48 = arith.constant 48 : index
    %c0_54 = arith.constant 0 : index
    %136 = vector.load %arg7[%c48, %c0_54] : memref<64x128xf32, #tpu.memory_space<vmem>>, vector<8x128xf32>
    %cst_55 = arith.constant dense<0.000000e+00> : vector<8x128xf32>
    %137 = tpu.matmul %134, %7, %cst_55 {dimension_numbers = #tpu.dot_dimension_numbers<[1], [0], [0], [1], [0, 0, 1, 1], [], []>} : vector<8x32xf32>, vector<32x128xf32>, vector<8x128xf32> -> vector<8x128xf32>
    %138 = arith.addf %136, %137 : vector<8x128xf32>
    %cst_56 = arith.constant 5.000000e-01 : f32
    %139 = vector.broadcast %cst_56 : f32 to vector<8x128xf32>
    %140 = arith.mulf %139, %138 : vector<8x128xf32>
    %141 = math.tanh %140 : vector<8x128xf32>
    %cst_57 = arith.constant 5.000000e-01 : f32
    %142 = vector.broadcast %cst_57 : f32 to vector<8x128xf32>
    %143 = arith.mulf %142, %141 : vector<8x128xf32>
    %cst_58 = arith.constant 5.000000e-01 : f32
    %144 = vector.broadcast %cst_58 : f32 to vector<8x128xf32>
    %145 = arith.addf %143, %144 : vector<8x128xf32>
    %146 = vector.extract_strided_slice %145 {offsets = [0, 0], sizes = [8, 32], strides = [1, 1]} : vector<8x128xf32> to vector<8x32xf32>
    %147 = vector.extract_strided_slice %145 {offsets = [0, 32], sizes = [8, 32], strides = [1, 1]} : vector<8x128xf32> to vector<8x32xf32>
    %148 = vector.extract_strided_slice %145 {offsets = [0, 64], sizes = [8, 32], strides = [1, 1]} : vector<8x128xf32> to vector<8x32xf32>
    %149 = vector.extract_strided_slice %138 {offsets = [0, 96], sizes = [8, 32], strides = [1, 1]} : vector<8x128xf32> to vector<8x32xf32>
    %150 = math.tanh %149 : vector<8x32xf32>
    %151 = arith.mulf %147, %132 : vector<8x32xf32>
    %152 = arith.mulf %146, %150 : vector<8x32xf32>
    %153 = arith.addf %151, %152 : vector<8x32xf32>
    %154 = math.tanh %153 : vector<8x32xf32>
    %155 = arith.mulf %148, %154 : vector<8x32xf32>
    %c48_59 = arith.constant 48 : index
    %c0_60 = arith.constant 0 : index
    %156 = vector.load %arg8[%c48_59, %c0_60] : memref<64x32xf32, #tpu.memory_space<vmem>>, vector<8x32xf32>
    tpu.vector_store %arg8[%c48_59, %c0_60], %155 {strides = array<i32>} : memref<64x32xf32, #tpu.memory_space<vmem>>, vector<8x32xf32>,
    %c56 = arith.constant 56 : index
    %c0_61 = arith.constant 0 : index
    %157 = vector.load %arg7[%c56, %c0_61] : memref<64x128xf32, #tpu.memory_space<vmem>>, vector<8x128xf32>
    %cst_62 = arith.constant dense<0.000000e+00> : vector<8x128xf32>
    %158 = tpu.matmul %155, %7, %cst_62 {dimension_numbers = #tpu.dot_dimension_numbers<[1], [0], [0], [1], [0, 0, 1, 1], [], []>} : vector<8x32xf32>, vector<32x128xf32>, vector<8x128xf32> -> vector<8x128xf32>
    %159 = arith.addf %157, %158 : vector<8x128xf32>
    %cst_63 = arith.constant 5.000000e-01 : f32
    %160 = vector.broadcast %cst_63 : f32 to vector<8x128xf32>
    %161 = arith.mulf %160, %159 : vector<8x128xf32>
    %162 = math.tanh %161 : vector<8x128xf32>
    %cst_64 = arith.constant 5.000000e-01 : f32
    %163 = vector.broadcast %cst_64 : f32 to vector<8x128xf32>
    %164 = arith.mulf %163, %162 : vector<8x128xf32>
    %cst_65 = arith.constant 5.000000e-01 : f32
    %165 = vector.broadcast %cst_65 : f32 to vector<8x128xf32>
    %166 = arith.addf %164, %165 : vector<8x128xf32>
    %167 = vector.extract_strided_slice %166 {offsets = [0, 0], sizes = [8, 32], strides = [1, 1]} : vector<8x128xf32> to vector<8x32xf32>
    %168 = vector.extract_strided_slice %166 {offsets = [0, 32], sizes = [8, 32], strides = [1, 1]} : vector<8x128xf32> to vector<8x32xf32>
    %169 = vector.extract_strided_slice %166 {offsets = [0, 64], sizes = [8, 32], strides = [1, 1]} : vector<8x128xf32> to vector<8x32xf32>
    %170 = vector.extract_strided_slice %159 {offsets = [0, 96], sizes = [8, 32], strides = [1, 1]} : vector<8x128xf32> to vector<8x32xf32>
    %171 = math.tanh %170 : vector<8x32xf32>
    %172 = arith.mulf %168, %153 : vector<8x32xf32>
    %173 = arith.mulf %167, %171 : vector<8x32xf32>
    %174 = arith.addf %172, %173 : vector<8x32xf32>
    %175 = math.tanh %174 : vector<8x32xf32>
    %176 = arith.mulf %169, %175 : vector<8x32xf32>
    %c56_66 = arith.constant 56 : index
    %c0_67 = arith.constant 0 : index
    %177 = vector.load %arg8[%c56_66, %c0_67] : memref<64x32xf32, #tpu.memory_space<vmem>>, vector<8x32xf32>
    tpu.vector_store %arg8[%c56_66, %c0_67], %176 {strides = array<i32>} : memref<64x32xf32, #tpu.memory_space<vmem>>, vector<8x32xf32>,
    %c0_68 = arith.constant 0 : index
    %c0_69 = arith.constant 0 : index
    %178 = vector.load %arg8[%c0_68, %c0_69] : memref<64x32xf32, #tpu.memory_space<vmem>>, vector<64x32xf32>
    %c0_70 = arith.constant 0 : index
    %c0_71 = arith.constant 0 : index
    %179 = vector.load %arg4[%c0_70, %c0_71] : memref<32x4xf32, #tpu.memory_space<vmem>>, vector<32x4xf32>
    %cst_72 = arith.constant dense<0.000000e+00> : vector<64x4xf32>
    %180 = tpu.matmul %178, %179, %cst_72 {dimension_numbers = #tpu.dot_dimension_numbers<[1], [0], [0], [1], [0, 0, 1, 1], [], []>} : vector<64x32xf32>, vector<32x4xf32>, vector<64x4xf32> -> vector<64x4xf32>
    %c0_73 = arith.constant 0 : index
    %c0_74 = arith.constant 0 : index
    %181 = vector.load %arg5[%c0_73, %c0_74] : memref<1x4xf32, #tpu.memory_space<vmem>>, vector<1x4xf32>
    %182 = vector.broadcast %181 : vector<1x4xf32> to vector<64x4xf32>
    %183 = arith.addf %180, %182 : vector<64x4xf32>
    %c0_75 = arith.constant 0 : index
    %c0_76 = arith.constant 0 : index
    %184 = vector.load %arg6[%c0_75, %c0_76] : memref<64x4xf32, #tpu.memory_space<vmem>>, vector<64x4xf32>
    tpu.vector_store %arg6[%c0_75, %c0_76], %183 {strides = array<i32>} : memref<64x4xf32, #tpu.memory_space<vmem>>, vector<64x4xf32>,
    return
  }
}

</mosaic_0001>

<llo_original>
// kernel: lstm_forward.1
$region0: #{lstm_forward.1}
  #allocation0 [shape = 'u32[]', space=smem, size = 0x4, offset = 0x4, fixed_abs, tag = 'smem constant byte address 0x4 - core index']
  #allocation1 [shape = 'u32[144,128]{1,0:T(1,128)}', space=vmem, size = 0x12000, scoped, tag = 'internal scratch']
  #allocation2 [shape = 'f32[64,128]{1,0:T(8,128)}', space=vmem, size = 0x8000, scoped, tag = 'scratch operand']
  #allocation3 [shape = 'f32[64,32]{1,0:T(8,128)}', space=vmem, size = 0x8000, scoped, tag = 'scratch operand']
  %s0 = inlined_call_operand.vmem [shape: f32[64,4], index: 0, kind: input, shape index: {}]
  %s1 = inlined_call_operand.vmem [shape: f32[4,128], index: 1, kind: input, shape index: {}]
  %s2 = inlined_call_operand.vmem [shape: f32[32,128], index: 2, kind: input, shape index: {}]
  %s3 = inlined_call_operand.vmem [shape: f32[1,128], index: 3, kind: input, shape index: {}]
  %s4 = inlined_call_operand.vmem [shape: f32[32,4], index: 4, kind: input, shape index: {}]
  %s5 = inlined_call_operand.vmem [shape: f32[1,4], index: 5, kind: input, shape index: {}]
  %s6 = inlined_call_operand.vmem [shape: f32[64,4], index: 6, kind: output, shape index: {}]
  %s7 = sld [smem:[#allocation0]]
  $region34: #{lstm_forward.1} parent=0
    _
  %s9 = ssub.s32 1, %s7
  %s10 = scalar_select 0, %s9, %s7
  // Predicated region
  $region2: #{lstm_forward.1} parent=0 // pred_check
    _
  $region3: #{lstm_forward.1} parent=0 // pred_check_branch
    %12 = sbr.rel (0) target = $region5
  $region4: #{lstm_forward.1} parent=0 // pred_region
    _
  $region5: #{lstm_forward.1} parent=0 // pred_fallthru
    _
  // Predicated region
  $region6: #{lstm_forward.1} parent=0 // pred_check
    _
  $region7: #{lstm_forward.1} parent=0 // pred_check_branch
    %14 = sbr.rel (0) target = $region9
  $region8: #{lstm_forward.1} parent=0 // pred_region
    _
  $region9: #{lstm_forward.1} parent=0 // pred_fallthru
    _
  // Predicated region
  $region10: #{lstm_forward.1} parent=0 // pred_check
    _
  $region11: #{lstm_forward.1} parent=0 // pred_check_branch
    %16 = sbr.rel (0) target = $region13
  $region12: #{lstm_forward.1} parent=0 // pred_region
    _
  $region13: #{lstm_forward.1} parent=0 // pred_fallthru
    _
  // Predicated region
  $region14: #{lstm_forward.1} parent=0 // pred_check
    _
  $region15: #{lstm_forward.1} parent=0 // pred_check_branch
    %18 = sbr.rel (0) target = $region17
  $region16: #{lstm_forward.1} parent=0 // pred_region
    _
  $region17: #{lstm_forward.1} parent=0 // pred_fallthru
    _
  // Predicated region
  $region18: #{lstm_forward.1} parent=0 // pred_check
    _
  $region19: #{lstm_forward.1} parent=0 // pred_check_branch
    %20 = sbr.rel (0) target = $region21
  $region20: #{lstm_forward.1} parent=0 // pred_region
    _
  $region21: #{lstm_forward.1} parent=0 // pred_fallthru
    _
  // Predicated region
  $region22: #{lstm_forward.1} parent=0 // pred_check
    _
  $region23: #{lstm_forward.1} parent=0 // pred_check_branch
    %22 = sbr.rel (0) target = $region25
  $region24: #{lstm_forward.1} parent=0 // pred_region
    _
  $region25: #{lstm_forward.1} parent=0 // pred_fallthru
    _
  %v23 = vld [vmem:[%s0] sm:$0xff]
  %v24 = vld [vmem:[%s0 + $0x8] sm:$0xff]
  %v25 = vld [vmem:[%s0 + $0x10] sm:$0xff]
  %v26 = vld [vmem:[%s0 + $0x18] sm:$0xff]
  %v27 = vld [vmem:[%s0 + $0x20] sm:$0xff]
  %v28 = vld [vmem:[%s0 + $0x28] sm:$0xff]
  %v29 = vld [vmem:[%s0 + $0x30] sm:$0xff]
  %v30 = vld [vmem:[%s0 + $0x38] sm:$0xff]
  %v31 = vld [vmem:[%s1] sm:$0xf]
  %v32 = vld [vmem:[%s3] sm:$0x1]
  %v34 = vlaneseq
  %v35 = vshrl.u32 %v34, 7
  %v36 = vsub.s32 0, %v35
  %v37 = vrot.slane %v32, %v36
  %vm39 = vcmask 31744
  %v41 = vsel %vm39, %v23, 0
  %v44 = vsel %vm39, %v24, 0
  %v47 = vsel %vm39, %v25, 0
  %v50 = vsel %vm39, %v26, 0
  %v53 = vsel %vm39, %v27, 0
  %v56 = vsel %vm39, %v28, 0
  %v59 = vsel %vm39, %v29, 0
  %v62 = vsel %vm39, %v30, 0
  %vm64 = vcmask 1043456
  %v66 = vsel %vm64, %v31, 0
  %68 = vmatprep.subr.mxu0 0.0
  %69 = vmatpush1.msra.mxu0 %v66
  %70 = vmatprep.subr.mxu0 0.0
  %71 = vmatpush1.msra.mxu0 0.0
  %72 = vmatprep.subr.mxu0 0.0
  %73 = vmatpush1.msra.mxu0 0.0
  %74 = vmatprep.subr.mxu0 0.0
  %75 = vmatpush1.msra.mxu0 0.0
  %76 = vmatprep.subr.mxu0 0.0
  %77 = vmatpush1.msra.mxu0 0.0
  %78 = vmatprep.subr.mxu0 0.0
  %79 = vmatpush1.msra.mxu0 0.0
  %80 = vmatprep.subr.mxu0 0.0
  %81 = vmatpush1.msra.mxu0 0.0
  %82 = vmatprep.subr.mxu0 0.0
  %83 = vmatpush1.msra.mxu0 0.0
  %84 = vmatprep.subr.mxu0 0.0
  %85 = vmatpush1.msra.mxu0 0.0
  %86 = vmatprep.subr.mxu0 0.0
  %87 = vmatpush1.msra.mxu0 0.0
  %88 = vmatprep.subr.mxu0 0.0
  %89 = vmatpush1.msra.mxu0 0.0
  %90 = vmatprep.subr.mxu0 0.0
  %91 = vmatpush1.msra.mxu0 0.0
  %92 = vmatprep.subr.mxu0 0.0
  %93 = vmatpush1.msra.mxu0 0.0
  %94 = vmatprep.subr.mxu0 0.0
  %95 = vmatpush1.msra.mxu0 0.0
  %96 = vmatprep.subr.mxu0 0.0
  %97 = vmatpush1.msra.mxu0 0.0
  %98 = vmatprep.subr.mxu0 0.0
  %99 = vmatpush1.msra.mxu0 0.0
  %100 = vmatprep.subr.mxu0 0.0
  %101 = vmatpush1.msra.mxu0 0.0
  %102 = vmatprep.subr.mxu0 0.0
  %103 = vmatpush1.msra.mxu0 0.0
  %104 = vmatprep.subr.mxu0 0.0
  %105 = vmatpush1.msra.mxu0 0.0
  %106 = vmatprep.subr.mxu0 0.0
  %107 = vmatpush1.msra.mxu0 0.0
  %108 = vmatprep.subr.mxu0 0.0
  %109 = vmatpush1.msra.mxu0 0.0
  %110 = vmatprep.subr.mxu0 0.0
  %111 = vmatpush1.msra.mxu0 0.0
  %112 = vmatprep.subr.mxu0 0.0
  %113 = vmatpush1.msra.mxu0 0.0
  %114 = vmatprep.subr.mxu0 0.0
  %115 = vmatpush1.msra.mxu0 0.0
  %116 = vmatprep.subr.mxu0 0.0
  %117 = vmatpush1.msra.mxu0 0.0
  %118 = vmatprep.subr.mxu0 0.0
  %119 = vmatpush1.msra.mxu0 0.0
  %120 = vmatprep.subr.mxu0 0.0
  %121 = vmatpush1.msra.mxu0 0.0
  %122 = vmatprep.subr.mxu0 0.0
  %123 = vmatpush1.msra.mxu0 0.0
  %124 = vmatprep.subr.mxu0 0.0
  %125 = vmatpush1.msra.mxu0 0.0
  %126 = vmatprep.subr.mxu0 0.0
  %127 = vmatpush1.msra.mxu0 0.0
  %128 = vmatprep.subr.mxu0 0.0
  %129 = vmatpush1.msra.mxu0 0.0
  %130 = vmatprep.subr.mxu0 0.0
  %131 = vmatpush1.msra.mxu0 0.0
  %132 = vmatprep.mubr.f32.mxu0 0.0
  %133 = vmatmul.mubr.f32.gmra.mrb[0].mxu0 %v41
  %v134 = vpop.f32.mrb[0].mxu0
  %v135 = vadd.f32 %v37, %v134
  %v136 = vpop.f32.mrb[0].mxu0
  %137 = vmatprep.mubr.f32.mxu0 0.0
  %138 = vmatmul.mubr.f32.gmra.mrb[0].mxu0 %v44
  %v139 = vpop.f32.mrb[0].mxu0
  %v140 = vadd.f32 %v37, %v139
  %v141 = vpop.f32.mrb[0].mxu0
  %142 = vmatprep.mubr.f32.mxu0 0.0
  %143 = vmatmul.mubr.f32.gmra.mrb[0].mxu0 %v47
  %v144 = vpop.f32.mrb[0].mxu0
  %v145 = vadd.f32 %v37, %v144
  %v146 = vpop.f32.mrb[0].mxu0
  %147 = vmatprep.mubr.f32.mxu0 0.0
  %148 = vmatmul.mubr.f32.gmra.mrb[0].mxu0 %v50
  %v149 = vpop.f32.mrb[0].mxu0
  %v150 = vadd.f32 %v37, %v149
  %v151 = vpop.f32.mrb[0].mxu0
  %152 = vmatprep.mubr.f32.mxu0 0.0
  %153 = vmatmul.mubr.f32.gmra.mrb[0].mxu0 %v53
  %v154 = vpop.f32.mrb[0].mxu0
  %v155 = vadd.f32 %v37, %v154
  %v156 = vpop.f32.mrb[0].mxu0
  %157 = vmatprep.mubr.f32.mxu0 0.0
  %158 = vmatmul.mubr.f32.gmra.mrb[0].mxu0 %v56
  %v159 = vpop.f32.mrb[0].mxu0
  %v160 = vadd.f32 %v37, %v159
  %v161 = vpop.f32.mrb[0].mxu0
  %162 = vmatprep.mubr.f32.mxu0 0.0
  %163 = vmatmul.mubr.f32.gmra.mrb[0].mxu0 %v59
  %v164 = vpop.f32.mrb[0].mxu0
  %v165 = vadd.f32 %v37, %v164
  %v166 = vpop.f32.mrb[0].mxu0
  %167 = vmatprep.mubr.f32.mxu0 0.0
  %168 = vmatmul.mubr.f32.gmra.mrb[0].mxu0 %v62
  %v169 = vpop.f32.mrb[0].mxu0
  %v170 = vadd.f32 %v37, %v169
  %v171 = vpop.f32.mrb[0].mxu0
  %172 = vdwg.mxu0
  %173 = vst [vmem:[#allocation2] sm:$0xff] %v135
  %174 = vst [vmem:[#allocation2 + $0x8] sm:$0xff] %v140
  %175 = vst [vmem:[#allocation2 + $0x10] sm:$0xff] %v145
  %176 = vst [vmem:[#allocation2 + $0x18] sm:$0xff] %v150
  %177 = vst [vmem:[#allocation2 + $0x20] sm:$0xff] %v155
  %178 = vst [vmem:[#allocation2 + $0x28] sm:$0xff] %v160
  %179 = vst [vmem:[#allocation2 + $0x30] sm:$0xff] %v165
  %180 = vst [vmem:[#allocation2 + $0x38] sm:$0xff] %v170
  %v181 = vld [vmem:[%s2] sm:$0xff]
  %v182 = vld [vmem:[%s2 + $0x8] sm:$0xff]
  %v183 = vld [vmem:[%s2 + $0x10] sm:$0xff]
  %v184 = vld [vmem:[%s2 + $0x18] sm:$0xff]
  %v185 = vld [vmem:[#allocation2] sm:$0xff]
  %vm186 = vcmask 261120
  %v188 = vsel %vm186, 0.0, 0
  %190 = vmatprep.subr.mxu0 0.0
  %191 = vmatpush1.msra.mxu0 %v181
  %192 = vmatprep.subr.mxu0 0.0
  %193 = vmatpush1.msra.mxu0 %v182
  %194 = vmatprep.subr.mxu0 0.0
  %195 = vmatpush1.msra.mxu0 %v183
  %196 = vmatprep.subr.mxu0 0.0
  %197 = vmatpush1.msra.mxu0 %v184
  %198 = vmatprep.subr.mxu0 0.0
  %199 = vmatpush1.msra.mxu0 0.0
  %200 = vmatprep.subr.mxu0 0.0
  %201 = vmatpush1.msra.mxu0 0.0
  %202 = vmatprep.subr.mxu0 0.0
  %203 = vmatpush1.msra.mxu0 0.0
  %204 = vmatprep.subr.mxu0 0.0
  %205 = vmatpush1.msra.mxu0 0.0
  %206 = vmatprep.subr.mxu0 0.0
  %207 = vmatpush1.msra.mxu0 0.0
  %208 = vmatprep.subr.mxu0 0.0
  %209 = vmatpush1.msra.mxu0 0.0
  %210 = vmatprep.subr.mxu0 0.0
  %211 = vmatpush1.msra.mxu0 0.0
  %212 = vmatprep.subr.mxu0 0.0
  %213 = vmatpush1.msra.mxu0 0.0
  %214 = vmatprep.subr.mxu0 0.0
  %215 = vmatpush1.msra.mxu0 0.0
  %216 = vmatprep.subr.mxu0 0.0
  %217 = vmatpush1.msra.mxu0 0.0
  %218 = vmatprep.subr.mxu0 0.0
  %219 = vmatpush1.msra.mxu0 0.0
  %220 = vmatprep.subr.mxu0 0.0
  %221 = vmatpush1.msra.mxu0 0.0
  %222 = vmatprep.subr.mxu0 0.0
  %223 = vmatpush1.msra.mxu0 0.0
  %224 = vmatprep.subr.mxu0 0.0
  %225 = vmatpush1.msra.mxu0 0.0
  %226 = vmatprep.subr.mxu0 0.0
  %227 = vmatpush1.msra.mxu0 0.0
  %228 = vmatprep.subr.mxu0 0.0
  %229 = vmatpush1.msra.mxu0 0.0
  %230 = vmatprep.subr.mxu0 0.0
  %231 = vmatpush1.msra.mxu0 0.0
  %232 = vmatprep.subr.mxu0 0.0
  %233 = vmatpush1.msra.mxu0 0.0
  %234 = vmatprep.subr.mxu0 0.0
  %235 = vmatpush1.msra.mxu0 0.0
  %236 = vmatprep.subr.mxu0 0.0
  %237 = vmatpush1.msra.mxu0 0.0
  %238 = vmatprep.subr.mxu0 0.0
  %239 = vmatpush1.msra.mxu0 0.0
  %240 = vmatprep.subr.mxu0 0.0
  %241 = vmatpush1.msra.mxu0 0.0
  %242 = vmatprep.subr.mxu0 0.0
  %243 = vmatpush1.msra.mxu0 0.0
  %244 = vmatprep.subr.mxu0 0.0
  %245 = vmatpush1.msra.mxu0 0.0
  %246 = vmatprep.subr.mxu0 0.0
  %247 = vmatpush1.msra.mxu0 0.0
  %248 = vmatprep.subr.mxu0 0.0
  %249 = vmatpush1.msra.mxu0 0.0
  %250 = vmatprep.subr.mxu0 0.0
  %251 = vmatpush1.msra.mxu0 0.0
  %252 = vmatprep.subr.mxu0 0.0
  %253 = vmatpush1.msra.mxu0 0.0
  %254 = vmatprep.mubr.f32.mxu0 0.0
  %255 = vmatmul.mubr.f32.gmra.mrb[0].mxu0 %v188
  %v256 = vpop.f32.mrb[0].mxu0
  %v257 = vadd.f32 0.0, %v256
  %v258 = vpop.f32.mrb[0].mxu0
  %259 = vdwg.mxu0
  %v260 = vadd.f32 %v185, %v257
  %v261 = vmul.f32 %v260, 0.5
  %v262 = vtanh.pop %v261
  %v263 = vmul.f32 %v262, 0.5
  %v264 = vadd.f32 %v263, 0.5
  %v265 = vtanh.pop %v260
  %v266 = vmul.f32 %v264, 0.0
  %268 = vrot.lane.b32.xlu0 %v265, 32
  %v269 = vpop.permute.xlu0 %268
  %v271 = vmul.f32 %v264, %v269
  %273 = vrot.lane.b32.xlu0 %v271, 32
  %v274 = vpop.permute.xlu0 %273
  %v276 = vadd.f32 %v266, %v274
  %v277 = vtanh.pop %v276
  %279 = vrot.lane.b32.xlu0 %v277, 32
  %v280 = vpop.permute.xlu0 %279
  %v282 = vmul.f32 %v264, %v280
  %284 = vrot.lane.b32.xlu0 %v282, 64
  %v285 = vpop.permute.xlu0 %284
  %287 = vst.msk [vmem:[#allocation3] sm:$0xff] %vm186, %v285
  %v288 = vld [vmem:[#allocation2 + $0x8] sm:$0xff]
  %v289 = vsel %vm186, %v285, 0
  %291 = vmatprep.subr.mxu0 0.0
  %292 = vmatpush1.msra.mxu0 %v181
  %293 = vmatprep.subr.mxu0 0.0
  %294 = vmatpush1.msra.mxu0 %v182
  %295 = vmatprep.subr.mxu0 0.0
  %296 = vmatpush1.msra.mxu0 %v183
  %297 = vmatprep.subr.mxu0 0.0
  %298 = vmatpush1.msra.mxu0 %v184
  %299 = vmatprep.subr.mxu0 0.0
  %300 = vmatpush1.msra.mxu0 0.0
  %301 = vmatprep.subr.mxu0 0.0
  %302 = vmatpush1.msra.mxu0 0.0
  %303 = vmatprep.subr.mxu0 0.0
  %304 = vmatpush1.msra.mxu0 0.0
  %305 = vmatprep.subr.mxu0 0.0
  %306 = vmatpush1.msra.mxu0 0.0
  %307 = vmatprep.subr.mxu0 0.0
  %308 = vmatpush1.msra.mxu0 0.0
  %309 = vmatprep.subr.mxu0 0.0
  %310 = vmatpush1.msra.mxu0 0.0
  %311 = vmatprep.subr.mxu0 0.0
  %312 = vmatpush1.msra.mxu0 0.0
  %313 = vmatprep.subr.mxu0 0.0
  %314 = vmatpush1.msra.mxu0 0.0
  %315 = vmatprep.subr.mxu0 0.0
  %316 = vmatpush1.msra.mxu0 0.0
  %317 = vmatprep.subr.mxu0 0.0
  %318 = vmatpush1.msra.mxu0 0.0
  %319 = vmatprep.subr.mxu0 0.0
  %320 = vmatpush1.msra.mxu0 0.0
  %321 = vmatprep.subr.mxu0 0.0
  %322 = vmatpush1.msra.mxu0 0.0
  %323 = vmatprep.subr.mxu0 0.0
  %324 = vmatpush1.msra.mxu0 0.0
  %325 = vmatprep.subr.mxu0 0.0
  %326 = vmatpush1.msra.mxu0 0.0
  %327 = vmatprep.subr.mxu0 0.0
  %328 = vmatpush1.msra.mxu0 0.0
  %329 = vmatprep.subr.mxu0 0.0
  %330 = vmatpush1.msra.mxu0 0.0
  %331 = vmatprep.subr.mxu0 0.0
  %332 = vmatpush1.msra.mxu0 0.0
  %333 = vmatprep.subr.mxu0 0.0
  %334 = vmatpush1.msra.mxu0 0.0
  %335 = vmatprep.subr.mxu0 0.0
  %336 = vmatpush1.msra.mxu0 0.0
  %337 = vmatprep.subr.mxu0 0.0
  %338 = vmatpush1.msra.mxu0 0.0
  %339 = vmatprep.subr.mxu0 0.0
  %340 = vmatpush1.msra.mxu0 0.0
  %341 = vmatprep.subr.mxu0 0.0
  %342 = vmatpush1.msra.mxu0 0.0
  %343 = vmatprep.subr.mxu0 0.0
  %344 = vmatpush1.msra.mxu0 0.0
  %345 = vmatprep.subr.mxu0 0.0
  %346 = vmatpush1.msra.mxu0 0.0
  %347 = vmatprep.subr.mxu0 0.0
  %348 = vmatpush1.msra.mxu0 0.0
  %349 = vmatprep.subr.mxu0 0.0
  %350 = vmatpush1.msra.mxu0 0.0
  %351 = vmatprep.subr.mxu0 0.0
  %352 = vmatpush1.msra.mxu0 0.0
  %353 = vmatprep.subr.mxu0 0.0
  %354 = vmatpush1.msra.mxu0 0.0
  %355 = vmatprep.mubr.f32.mxu0 0.0
  %356 = vmatmul.mubr.f32.gmra.mrb[0].mxu0 %v289
  %v357 = vpop.f32.mrb[0].mxu0
  %v358 = vadd.f32 0.0, %v357
  %v359 = vpop.f32.mrb[0].mxu0
  %360 = vdwg.mxu0
  %v361 = vadd.f32 %v288, %v358
  %v362 = vmul.f32 %v361, 0.5
  %v363 = vtanh.pop %v362
  %v364 = vmul.f32 %v363, 0.5
  %v365 = vadd.f32 %v364, 0.5
  %v366 = vtanh.pop %v361
  %v367 = vmul.f32 %v365, %v276
  %369 = vrot.lane.b32.xlu0 %v366, 32
  %v370 = vpop.permute.xlu0 %369
  %v372 = vmul.f32 %v365, %v370
  %374 = vrot.lane.b32.xlu0 %v372, 32
  %v375 = vpop.permute.xlu0 %374
  %v377 = vadd.f32 %v367, %v375
  %v378 = vtanh.pop %v377
  %380 = vrot.lane.b32.xlu0 %v378, 32
  %v381 = vpop.permute.xlu0 %380
  %v383 = vmul.f32 %v365, %v381
  %385 = vrot.lane.b32.xlu0 %v383, 64
  %v386 = vpop.permute.xlu0 %385
  %388 = vst.msk [vmem:[#allocation3 + $0x8] sm:$0xff] %vm186, %v386
  %v389 = vld [vmem:[#allocation2 + $0x10] sm:$0xff]
  %v390 = vsel %vm186, %v386, 0
  %392 = vmatprep.subr.mxu0 0.0
  %393 = vmatpush1.msra.mxu0 %v181
  %394 = vmatprep.subr.mxu0 0.0
  %395 = vmatpush1.msra.mxu0 %v182
  %396 = vmatprep.subr.mxu0 0.0
  %397 = vmatpush1.msra.mxu0 %v183
  %398 = vmatprep.subr.mxu0 0.0
  %399 = vmatpush1.msra.mxu0 %v184
  %400 = vmatprep.subr.mxu0 0.0
  %401 = vmatpush1.msra.mxu0 0.0
  %402 = vmatprep.subr.mxu0 0.0
  %403 = vmatpush1.msra.mxu0 0.0
  %404 = vmatprep.subr.mxu0 0.0
  %405 = vmatpush1.msra.mxu0 0.0
  %406 = vmatprep.subr.mxu0 0.0
  %407 = vmatpush1.msra.mxu0 0.0
  %408 = vmatprep.subr.mxu0 0.0
  %409 = vmatpush1.msra.mxu0 0.0
  %410 = vmatprep.subr.mxu0 0.0
  %411 = vmatpush1.msra.mxu0 0.0
  %412 = vmatprep.subr.mxu0 0.0
  %413 = vmatpush1.msra.mxu0 0.0
  %414 = vmatprep.subr.mxu0 0.0
  %415 = vmatpush1.msra.mxu0 0.0
  %416 = vmatprep.subr.mxu0 0.0
  %417 = vmatpush1.msra.mxu0 0.0
  %418 = vmatprep.subr.mxu0 0.0
  %419 = vmatpush1.msra.mxu0 0.0
  %420 = vmatprep.subr.mxu0 0.0
  %421 = vmatpush1.msra.mxu0 0.0
  %422 = vmatprep.subr.mxu0 0.0
  %423 = vmatpush1.msra.mxu0 0.0
  %424 = vmatprep.subr.mxu0 0.0
  %425 = vmatpush1.msra.mxu0 0.0
  %426 = vmatprep.subr.mxu0 0.0
  %427 = vmatpush1.msra.mxu0 0.0
  %428 = vmatprep.subr.mxu0 0.0
  %429 = vmatpush1.msra.mxu0 0.0
  %430 = vmatprep.subr.mxu0 0.0
  %431 = vmatpush1.msra.mxu0 0.0
  %432 = vmatprep.subr.mxu0 0.0
  %433 = vmatpush1.msra.mxu0 0.0
  %434 = vmatprep.subr.mxu0 0.0
  %435 = vmatpush1.msra.mxu0 0.0
  %436 = vmatprep.subr.mxu0 0.0
  %437 = vmatpush1.msra.mxu0 0.0
  %438 = vmatprep.subr.mxu0 0.0
  %439 = vmatpush1.msra.mxu0 0.0
  %440 = vmatprep.subr.mxu0 0.0
  %441 = vmatpush1.msra.mxu0 0.0
  %442 = vmatprep.subr.mxu0 0.0
  %443 = vmatpush1.msra.mxu0 0.0
  %444 = vmatprep.subr.mxu0 0.0
  %445 = vmatpush1.msra.mxu0 0.0
  %446 = vmatprep.subr.mxu0 0.0
  %447 = vmatpush1.msra.mxu0 0.0
  %448 = vmatprep.subr.mxu0 0.0
  %449 = vmatpush1.msra.mxu0 0.0
  %450 = vmatprep.subr.mxu0 0.0
  %451 = vmatpush1.msra.mxu0 0.0
  %452 = vmatprep.subr.mxu0 0.0
  %453 = vmatpush1.msra.mxu0 0.0
  %454 = vmatprep.subr.mxu0 0.0
  %455 = vmatpush1.msra.mxu0 0.0
  %456 = vmatprep.mubr.f32.mxu0 0.0
  %457 = vmatmul.mubr.f32.gmra.mrb[0].mxu0 %v390
  %v458 = vpop.f32.mrb[0].mxu0
  %v459 = vadd.f32 0.0, %v458
  %v460 = vpop.f32.mrb[0].mxu0
  %461 = vdwg.mxu0
  %v462 = vadd.f32 %v389, %v459
  %v463 = vmul.f32 %v462, 0.5
  %v464 = vtanh.pop %v463
  %v465 = vmul.f32 %v464, 0.5
  %v466 = vadd.f32 %v465, 0.5
  %v467 = vtanh.pop %v462
  %v468 = vmul.f32 %v466, %v377
  %470 = vrot.lane.b32.xlu0 %v467, 32
  %v471 = vpop.permute.xlu0 %470
  %v473 = vmul.f32 %v466, %v471
  %475 = vrot.lane.b32.xlu0 %v473, 32
  %v476 = vpop.permute.xlu0 %475
  %v478 = vadd.f32 %v468, %v476
  %v479 = vtanh.pop %v478
  %481 = vrot.lane.b32.xlu0 %v479, 32
  %v482 = vpop.permute.xlu0 %481
  %v484 = vmul.f32 %v466, %v482
  %486 = vrot.lane.b32.xlu0 %v484, 64
  %v487 = vpop.permute.xlu0 %486
  %489 = vst.msk [vmem:[#allocation3 + $0x10] sm:$0xff] %vm186, %v487
  %v490 = vld [vmem:[#allocation2 + $0x18] sm:$0xff]
  %v491 = vsel %vm186, %v487, 0
  %493 = vmatprep.subr.mxu0 0.0
  %494 = vmatpush1.msra.mxu0 %v181
  %495 = vmatprep.subr.mxu0 0.0
  %496 = vmatpush1.msra.mxu0 %v182
  %497 = vmatprep.subr.mxu0 0.0
  %498 = vmatpush1.msra.mxu0 %v183
  %499 = vmatprep.subr.mxu0 0.0
  %500 = vmatpush1.msra.mxu0 %v184
  %501 = vmatprep.subr.mxu0 0.0
  %502 = vmatpush1.msra.mxu0 0.0
  %503 = vmatprep.subr.mxu0 0.0
  %504 = vmatpush1.msra.mxu0 0.0
  %505 = vmatprep.subr.mxu0 0.0
  %506 = vmatpush1.msra.mxu0 0.0
  %507 = vmatprep.subr.mxu0 0.0
  %508 = vmatpush1.msra.mxu0 0.0
  %509 = vmatprep.subr.mxu0 0.0
  %510 = vmatpush1.msra.mxu0 0.0
  %511 = vmatprep.subr.mxu0 0.0
  %512 = vmatpush1.msra.mxu0 0.0
  %513 = vmatprep.subr.mxu0 0.0
  %514 = vmatpush1.msra.mxu0 0.0
  %515 = vmatprep.subr.mxu0 0.0
  %516 = vmatpush1.msra.mxu0 0.0
  %517 = vmatprep.subr.mxu0 0.0
  %518 = vmatpush1.msra.mxu0 0.0
  %519 = vmatprep.subr.mxu0 0.0
  %520 = vmatpush1.msra.mxu0 0.0
  %521 = vmatprep.subr.mxu0 0.0
  %522 = vmatpush1.msra.mxu0 0.0
  %523 = vmatprep.subr.mxu0 0.0
  %524 = vmatpush1.msra.mxu0 0.0
  %525 = vmatprep.subr.mxu0 0.0
  %526 = vmatpush1.msra.mxu0 0.0
  %527 = vmatprep.subr.mxu0 0.0
  %528 = vmatpush1.msra.mxu0 0.0
  %529 = vmatprep.subr.mxu0 0.0
  %530 = vmatpush1.msra.mxu0 0.0
  %531 = vmatprep.subr.mxu0 0.0
  %532 = vmatpush1.msra.mxu0 0.0
  %533 = vmatprep.subr.mxu0 0.0
  %534 = vmatpush1.msra.mxu0 0.0
  %535 = vmatprep.subr.mxu0 0.0
  %536 = vmatpush1.msra.mxu0 0.0
  %537 = vmatprep.subr.mxu0 0.0
  %538 = vmatpush1.msra.mxu0 0.0
  %539 = vmatprep.subr.mxu0 0.0
  %540 = vmatpush1.msra.mxu0 0.0
  %541 = vmatprep.subr.mxu0 0.0
  %542 = vmatpush1.msra.mxu0 0.0
  %543 = vmatprep.subr.mxu0 0.0
  %544 = vmatpush1.msra.mxu0 0.0
  %545 = vmatprep.subr.mxu0 0.0
  %546 = vmatpush1.msra.mxu0 0.0
  %547 = vmatprep.subr.mxu0 0.0
  %548 = vmatpush1.msra.mxu0 0.0
  %549 = vmatprep.subr.mxu0 0.0
  %550 = vmatpush1.msra.mxu0 0.0
  %551 = vmatprep.subr.mxu0 0.0
  %552 = vmatpush1.msra.mxu0 0.0
  %553 = vmatprep.subr.mxu0 0.0
  %554 = vmatpush1.msra.mxu0 0.0
  %555 = vmatprep.subr.mxu0 0.0
  %556 = vmatpush1.msra.mxu0 0.0
  %557 = vmatprep.mubr.f32.mxu0 0.0
  %558 = vmatmul.mubr.f32.gmra.mrb[0].mxu0 %v491
  %v559 = vpop.f32.mrb[0].mxu0
  %v560 = vadd.f32 0.0, %v559
  %v561 = vpop.f32.mrb[0].mxu0
  %562 = vdwg.mxu0
  %v563 = vadd.f32 %v490, %v560
  %v564 = vmul.f32 %v563, 0.5
  %v565 = vtanh.pop %v564
  %v566 = vmul.f32 %v565, 0.5
  %v567 = vadd.f32 %v566, 0.5
  %v568 = vtanh.pop %v563
  %v569 = vmul.f32 %v567, %v478
  %571 = vrot.lane.b32.xlu0 %v568, 32
  %v572 = vpop.permute.xlu0 %571
  %v574 = vmul.f32 %v567, %v572
  %576 = vrot.lane.b32.xlu0 %v574, 32
  %v577 = vpop.permute.xlu0 %576
  %v579 = vadd.f32 %v569, %v577
  %v580 = vtanh.pop %v579
  %582 = vrot.lane.b32.xlu0 %v580, 32
  %v583 = vpop.permute.xlu0 %582
  %v585 = vmul.f32 %v567, %v583
  %587 = vrot.lane.b32.xlu0 %v585, 64
  %v588 = vpop.permute.xlu0 %587
  %590 = vst.msk [vmem:[#allocation3 + $0x18] sm:$0xff] %vm186, %v588
  %v591 = vld [vmem:[#allocation2 + $0x20] sm:$0xff]
  %v592 = vsel %vm186, %v588, 0
  %594 = vmatprep.subr.mxu0 0.0
  %595 = vmatpush1.msra.mxu0 %v181
  %596 = vmatprep.subr.mxu0 0.0
  %597 = vmatpush1.msra.mxu0 %v182
  %598 = vmatprep.subr.mxu0 0.0
  %599 = vmatpush1.msra.mxu0 %v183
  %600 = vmatprep.subr.mxu0 0.0
  %601 = vmatpush1.msra.mxu0 %v184
  %602 = vmatprep.subr.mxu0 0.0
  %603 = vmatpush1.msra.mxu0 0.0
  %604 = vmatprep.subr.mxu0 0.0
  %605 = vmatpush1.msra.mxu0 0.0
  %606 = vmatprep.subr.mxu0 0.0
  %607 = vmatpush1.msra.mxu0 0.0
  %608 = vmatprep.subr.mxu0 0.0
  %609 = vmatpush1.msra.mxu0 0.0
  %610 = vmatprep.subr.mxu0 0.0
  %611 = vmatpush1.msra.mxu0 0.0
  %612 = vmatprep.subr.mxu0 0.0
  %613 = vmatpush1.msra.mxu0 0.0
  %614 = vmatprep.subr.mxu0 0.0
  %615 = vmatpush1.msra.mxu0 0.0
  %616 = vmatprep.subr.mxu0 0.0
  %617 = vmatpush1.msra.mxu0 0.0
  %618 = vmatprep.subr.mxu0 0.0
  %619 = vmatpush1.msra.mxu0 0.0
  %620 = vmatprep.subr.mxu0 0.0
  %621 = vmatpush1.msra.mxu0 0.0
  %622 = vmatprep.subr.mxu0 0.0
  %623 = vmatpush1.msra.mxu0 0.0
  %624 = vmatprep.subr.mxu0 0.0
  %625 = vmatpush1.msra.mxu0 0.0
  %626 = vmatprep.subr.mxu0 0.0
  %627 = vmatpush1.msra.mxu0 0.0
  %628 = vmatprep.subr.mxu0 0.0
  %629 = vmatpush1.msra.mxu0 0.0
  %630 = vmatprep.subr.mxu0 0.0
  %631 = vmatpush1.msra.mxu0 0.0
  %632 = vmatprep.subr.mxu0 0.0
  %633 = vmatpush1.msra.mxu0 0.0
  %634 = vmatprep.subr.mxu0 0.0
  %635 = vmatpush1.msra.mxu0 0.0
  %636 = vmatprep.subr.mxu0 0.0
  %637 = vmatpush1.msra.mxu0 0.0
  %638 = vmatprep.subr.mxu0 0.0
  %639 = vmatpush1.msra.mxu0 0.0
  %640 = vmatprep.subr.mxu0 0.0
  %641 = vmatpush1.msra.mxu0 0.0
  %642 = vmatprep.subr.mxu0 0.0
  %643 = vmatpush1.msra.mxu0 0.0
  %644 = vmatprep.subr.mxu0 0.0
  %645 = vmatpush1.msra.mxu0 0.0
  %646 = vmatprep.subr.mxu0 0.0
  %647 = vmatpush1.msra.mxu0 0.0
  %648 = vmatprep.subr.mxu0 0.0
  %649 = vmatpush1.msra.mxu0 0.0
  %650 = vmatprep.subr.mxu0 0.0
  %651 = vmatpush1.msra.mxu0 0.0
  %652 = vmatprep.subr.mxu0 0.0
  %653 = vmatpush1.msra.mxu0 0.0
  %654 = vmatprep.subr.mxu0 0.0
  %655 = vmatpush1.msra.mxu0 0.0
  %656 = vmatprep.subr.mxu0 0.0
  %657 = vmatpush1.msra.mxu0 0.0
  %658 = vmatprep.mubr.f32.mxu0 0.0
  %659 = vmatmul.mubr.f32.gmra.mrb[0].mxu0 %v592
  %v660 = vpop.f32.mrb[0].mxu0
  %v661 = vadd.f32 0.0, %v660
  %v662 = vpop.f32.mrb[0].mxu0
  %663 = vdwg.mxu0
  %v664 = vadd.f32 %v591, %v661
  %v665 = vmul.f32 %v664, 0.5
  %v666 = vtanh.pop %v665
  %v667 = vmul.f32 %v666, 0.5
  %v668 = vadd.f32 %v667, 0.5
  %v669 = vtanh.pop %v664
  %v670 = vmul.f32 %v668, %v579
  %672 = vrot.lane.b32.xlu0 %v669, 32
  %v673 = vpop.permute.xlu0 %672
  %v675 = vmul.f32 %v668, %v673
  %677 = vrot.lane.b32.xlu0 %v675, 32
  %v678 = vpop.permute.xlu0 %677
  %v680 = vadd.f32 %v670, %v678
  %v681 = vtanh.pop %v680
  %683 = vrot.lane.b32.xlu0 %v681, 32
  %v684 = vpop.permute.xlu0 %683
  %v686 = vmul.f32 %v668, %v684
  %688 = vrot.lane.b32.xlu0 %v686, 64
  %v689 = vpop.permute.xlu0 %688
  %691 = vst.msk [vmem:[#allocation3 + $0x20] sm:$0xff] %vm186, %v689
  %v692 = vld [vmem:[#allocation2 + $0x28] sm:$0xff]
  %v693 = vsel %vm186, %v689, 0
  %695 = vmatprep.subr.mxu0 0.0
  %696 = vmatpush1.msra.mxu0 %v181
  %697 = vmatprep.subr.mxu0 0.0
  %698 = vmatpush1.msra.mxu0 %v182
  %699 = vmatprep.subr.mxu0 0.0
  %700 = vmatpush1.msra.mxu0 %v183
  %701 = vmatprep.subr.mxu0 0.0
  %702 = vmatpush1.msra.mxu0 %v184
  %703 = vmatprep.subr.mxu0 0.0
  %704 = vmatpush1.msra.mxu0 0.0
  %705 = vmatprep.subr.mxu0 0.0
  %706 = vmatpush1.msra.mxu0 0.0
  %707 = vmatprep.subr.mxu0 0.0
  %708 = vmatpush1.msra.mxu0 0.0
  %709 = vmatprep.subr.mxu0 0.0
  %710 = vmatpush1.msra.mxu0 0.0
  %711 = vmatprep.subr.mxu0 0.0
  %712 = vmatpush1.msra.mxu0 0.0
  %713 = vmatprep.subr.mxu0 0.0
  %714 = vmatpush1.msra.mxu0 0.0
  %715 = vmatprep.subr.mxu0 0.0
  %716 = vmatpush1.msra.mxu0 0.0
  %717 = vmatprep.subr.mxu0 0.0
  %718 = vmatpush1.msra.mxu0 0.0
  %719 = vmatprep.subr.mxu0 0.0
  %720 = vmatpush1.msra.mxu0 0.0
  %721 = vmatprep.subr.mxu0 0.0
  %722 = vmatpush1.msra.mxu0 0.0
  %723 = vmatprep.subr.mxu0 0.0
  %724 = vmatpush1.msra.mxu0 0.0
  %725 = vmatprep.subr.mxu0 0.0
  %726 = vmatpush1.msra.mxu0 0.0
  %727 = vmatprep.subr.mxu0 0.0
  %728 = vmatpush1.msra.mxu0 0.0
  %729 = vmatprep.subr.mxu0 0.0
  %730 = vmatpush1.msra.mxu0 0.0
  %731 = vmatprep.subr.mxu0 0.0
  %732 = vmatpush1.msra.mxu0 0.0
  %733 = vmatprep.subr.mxu0 0.0
  %734 = vmatpush1.msra.mxu0 0.0
  %735 = vmatprep.subr.mxu0 0.0
  %736 = vmatpush1.msra.mxu0 0.0
  %737 = vmatprep.subr.mxu0 0.0
  %738 = vmatpush1.msra.mxu0 0.0
  %739 = vmatprep.subr.mxu0 0.0
  %740 = vmatpush1.msra.mxu0 0.0
  %741 = vmatprep.subr.mxu0 0.0
  %742 = vmatpush1.msra.mxu0 0.0
  %743 = vmatprep.subr.mxu0 0.0
  %744 = vmatpush1.msra.mxu0 0.0
  %745 = vmatprep.subr.mxu0 0.0
  %746 = vmatpush1.msra.mxu0 0.0
  %747 = vmatprep.subr.mxu0 0.0
  %748 = vmatpush1.msra.mxu0 0.0
  %749 = vmatprep.subr.mxu0 0.0
  %750 = vmatpush1.msra.mxu0 0.0
  %751 = vmatprep.subr.mxu0 0.0
  %752 = vmatpush1.msra.mxu0 0.0
  %753 = vmatprep.subr.mxu0 0.0
  %754 = vmatpush1.msra.mxu0 0.0
  %755 = vmatprep.subr.mxu0 0.0
  %756 = vmatpush1.msra.mxu0 0.0
  %757 = vmatprep.subr.mxu0 0.0
  %758 = vmatpush1.msra.mxu0 0.0
  %759 = vmatprep.mubr.f32.mxu0 0.0
  %760 = vmatmul.mubr.f32.gmra.mrb[0].mxu0 %v693
  %v761 = vpop.f32.mrb[0].mxu0
  %v762 = vadd.f32 0.0, %v761
  %v763 = vpop.f32.mrb[0].mxu0
  %764 = vdwg.mxu0
  %v765 = vadd.f32 %v692, %v762
  %v766 = vmul.f32 %v765, 0.5
  %v767 = vtanh.pop %v766
  %v768 = vmul.f32 %v767, 0.5
  %v769 = vadd.f32 %v768, 0.5
  %v770 = vtanh.pop %v765
  %v771 = vmul.f32 %v769, %v680
  %773 = vrot.lane.b32.xlu0 %v770, 32
  %v774 = vpop.permute.xlu0 %773
  %v776 = vmul.f32 %v769, %v774
  %778 = vrot.lane.b32.xlu0 %v776, 32
  %v779 = vpop.permute.xlu0 %778
  %v781 = vadd.f32 %v771, %v779
  %v782 = vtanh.pop %v781
  %784 = vrot.lane.b32.xlu0 %v782, 32
  %v785 = vpop.permute.xlu0 %784
  %v787 = vmul.f32 %v769, %v785
  %789 = vrot.lane.b32.xlu0 %v787, 64
  %v790 = vpop.permute.xlu0 %789
  %792 = vst.msk [vmem:[#allocation3 + $0x28] sm:$0xff] %vm186, %v790
  %v793 = vld [vmem:[#allocation2 + $0x30] sm:$0xff]
  %v794 = vsel %vm186, %v790, 0
  %796 = vmatprep.subr.mxu0 0.0
  %797 = vmatpush1.msra.mxu0 %v181
  %798 = vmatprep.subr.mxu0 0.0
  %799 = vmatpush1.msra.mxu0 %v182
  %800 = vmatprep.subr.mxu0 0.0
  %801 = vmatpush1.msra.mxu0 %v183
  %802 = vmatprep.subr.mxu0 0.0
  %803 = vmatpush1.msra.mxu0 %v184
  %804 = vmatprep.subr.mxu0 0.0
  %805 = vmatpush1.msra.mxu0 0.0
  %806 = vmatprep.subr.mxu0 0.0
  %807 = vmatpush1.msra.mxu0 0.0
  %808 = vmatprep.subr.mxu0 0.0
  %809 = vmatpush1.msra.mxu0 0.0
  %810 = vmatprep.subr.mxu0 0.0
  %811 = vmatpush1.msra.mxu0 0.0
  %812 = vmatprep.subr.mxu0 0.0
  %813 = vmatpush1.msra.mxu0 0.0
  %814 = vmatprep.subr.mxu0 0.0
  %815 = vmatpush1.msra.mxu0 0.0
  %816 = vmatprep.subr.mxu0 0.0
  %817 = vmatpush1.msra.mxu0 0.0
  %818 = vmatprep.subr.mxu0 0.0
  %819 = vmatpush1.msra.mxu0 0.0
  %820 = vmatprep.subr.mxu0 0.0
  %821 = vmatpush1.msra.mxu0 0.0
  %822 = vmatprep.subr.mxu0 0.0
  %823 = vmatpush1.msra.mxu0 0.0
  %824 = vmatprep.subr.mxu0 0.0
  %825 = vmatpush1.msra.mxu0 0.0
  %826 = vmatprep.subr.mxu0 0.0
  %827 = vmatpush1.msra.mxu0 0.0
  %828 = vmatprep.subr.mxu0 0.0
  %829 = vmatpush1.msra.mxu0 0.0
  %830 = vmatprep.subr.mxu0 0.0
  %831 = vmatpush1.msra.mxu0 0.0
  %832 = vmatprep.subr.mxu0 0.0
  %833 = vmatpush1.msra.mxu0 0.0
  %834 = vmatprep.subr.mxu0 0.0
  %835 = vmatpush1.msra.mxu0 0.0
  %836 = vmatprep.subr.mxu0 0.0
  %837 = vmatpush1.msra.mxu0 0.0
  %838 = vmatprep.subr.mxu0 0.0
  %839 = vmatpush1.msra.mxu0 0.0
  %840 = vmatprep.subr.mxu0 0.0
  %841 = vmatpush1.msra.mxu0 0.0
  %842 = vmatprep.subr.mxu0 0.0
  %843 = vmatpush1.msra.mxu0 0.0
  %844 = vmatprep.subr.mxu0 0.0
  %845 = vmatpush1.msra.mxu0 0.0
  %846 = vmatprep.subr.mxu0 0.0
  %847 = vmatpush1.msra.mxu0 0.0
  %848 = vmatprep.subr.mxu0 0.0
  %849 = vmatpush1.msra.mxu0 0.0
  %850 = vmatprep.subr.mxu0 0.0
  %851 = vmatpush1.msra.mxu0 0.0
  %852 = vmatprep.subr.mxu0 0.0
  %853 = vmatpush1.msra.mxu0 0.0
  %854 = vmatprep.subr.mxu0 0.0
  %855 = vmatpush1.msra.mxu0 0.0
  %856 = vmatprep.subr.mxu0 0.0
  %857 = vmatpush1.msra.mxu0 0.0
  %858 = vmatprep.subr.mxu0 0.0
  %859 = vmatpush1.msra.mxu0 0.0
  %860 = vmatprep.mubr.f32.mxu0 0.0
  %861 = vmatmul.mubr.f32.gmra.mrb[0].mxu0 %v794
  %v862 = vpop.f32.mrb[0].mxu0
  %v863 = vadd.f32 0.0, %v862
  %v864 = vpop.f32.mrb[0].mxu0
  %865 = vdwg.mxu0
  %v866 = vadd.f32 %v793, %v863
  %v867 = vmul.f32 %v866, 0.5
  %v868 = vtanh.pop %v867
  %v869 = vmul.f32 %v868, 0.5
  %v870 = vadd.f32 %v869, 0.5
  %v871 = vtanh.pop %v866
  %v872 = vmul.f32 %v870, %v781
  %874 = vrot.lane.b32.xlu0 %v871, 32
  %v875 = vpop.permute.xlu0 %874
  %v877 = vmul.f32 %v870, %v875
  %879 = vrot.lane.b32.xlu0 %v877, 32
  %v880 = vpop.permute.xlu0 %879
  %v882 = vadd.f32 %v872, %v880
  %v883 = vtanh.pop %v882
  %885 = vrot.lane.b32.xlu0 %v883, 32
  %v886 = vpop.permute.xlu0 %885
  %v888 = vmul.f32 %v870, %v886
  %890 = vrot.lane.b32.xlu0 %v888, 64
  %v891 = vpop.permute.xlu0 %890
  %893 = vst.msk [vmem:[#allocation3 + $0x30] sm:$0xff] %vm186, %v891
  %v894 = vld [vmem:[#allocation2 + $0x38] sm:$0xff]
  %v895 = vsel %vm186, %v891, 0
  %897 = vmatprep.subr.mxu0 0.0
  %898 = vmatpush1.msra.mxu0 %v181
  %899 = vmatprep.subr.mxu0 0.0
  %900 = vmatpush1.msra.mxu0 %v182
  %901 = vmatprep.subr.mxu0 0.0
  %902 = vmatpush1.msra.mxu0 %v183
  %903 = vmatprep.subr.mxu0 0.0
  %904 = vmatpush1.msra.mxu0 %v184
  %905 = vmatprep.subr.mxu0 0.0
  %906 = vmatpush1.msra.mxu0 0.0
  %907 = vmatprep.subr.mxu0 0.0
  %908 = vmatpush1.msra.mxu0 0.0
  %909 = vmatprep.subr.mxu0 0.0
  %910 = vmatpush1.msra.mxu0 0.0
  %911 = vmatprep.subr.mxu0 0.0
  %912 = vmatpush1.msra.mxu0 0.0
  %913 = vmatprep.subr.mxu0 0.0
  %914 = vmatpush1.msra.mxu0 0.0
  %915 = vmatprep.subr.mxu0 0.0
  %916 = vmatpush1.msra.mxu0 0.0
  %917 = vmatprep.subr.mxu0 0.0
  %918 = vmatpush1.msra.mxu0 0.0
  %919 = vmatprep.subr.mxu0 0.0
  %920 = vmatpush1.msra.mxu0 0.0
  %921 = vmatprep.subr.mxu0 0.0
  %922 = vmatpush1.msra.mxu0 0.0
  %923 = vmatprep.subr.mxu0 0.0
  %924 = vmatpush1.msra.mxu0 0.0
  %925 = vmatprep.subr.mxu0 0.0
  %926 = vmatpush1.msra.mxu0 0.0
  %927 = vmatprep.subr.mxu0 0.0
  %928 = vmatpush1.msra.mxu0 0.0
  %929 = vmatprep.subr.mxu0 0.0
  %930 = vmatpush1.msra.mxu0 0.0
  %931 = vmatprep.subr.mxu0 0.0
  %932 = vmatpush1.msra.mxu0 0.0
  %933 = vmatprep.subr.mxu0 0.0
  %934 = vmatpush1.msra.mxu0 0.0
  %935 = vmatprep.subr.mxu0 0.0
  %936 = vmatpush1.msra.mxu0 0.0
  %937 = vmatprep.subr.mxu0 0.0
  %938 = vmatpush1.msra.mxu0 0.0
  %939 = vmatprep.subr.mxu0 0.0
  %940 = vmatpush1.msra.mxu0 0.0
  %941 = vmatprep.subr.mxu0 0.0
  %942 = vmatpush1.msra.mxu0 0.0
  %943 = vmatprep.subr.mxu0 0.0
  %944 = vmatpush1.msra.mxu0 0.0
  %945 = vmatprep.subr.mxu0 0.0
  %946 = vmatpush1.msra.mxu0 0.0
  %947 = vmatprep.subr.mxu0 0.0
  %948 = vmatpush1.msra.mxu0 0.0
  %949 = vmatprep.subr.mxu0 0.0
  %950 = vmatpush1.msra.mxu0 0.0
  %951 = vmatprep.subr.mxu0 0.0
  %952 = vmatpush1.msra.mxu0 0.0
  %953 = vmatprep.subr.mxu0 0.0
  %954 = vmatpush1.msra.mxu0 0.0
  %955 = vmatprep.subr.mxu0 0.0
  %956 = vmatpush1.msra.mxu0 0.0
  %957 = vmatprep.subr.mxu0 0.0
  %958 = vmatpush1.msra.mxu0 0.0
  %959 = vmatprep.subr.mxu0 0.0
  %960 = vmatpush1.msra.mxu0 0.0
  %961 = vmatprep.mubr.f32.mxu0 0.0
  %962 = vmatmul.mubr.f32.gmra.mrb[0].mxu0 %v895
  %v963 = vpop.f32.mrb[0].mxu0
  %v964 = vadd.f32 0.0, %v963
  %v965 = vpop.f32.mrb[0].mxu0
  %966 = vdwg.mxu0
  %v967 = vadd.f32 %v894, %v964
  %v968 = vmul.f32 %v967, 0.5
  %v969 = vtanh.pop %v968
  %v970 = vmul.f32 %v969, 0.5
  %v971 = vadd.f32 %v970, 0.5
  %v972 = vtanh.pop %v967
  %v973 = vmul.f32 %v971, %v882
  %975 = vrot.lane.b32.xlu0 %v972, 32
  %v976 = vpop.permute.xlu0 %975
  %v978 = vmul.f32 %v971, %v976
  %980 = vrot.lane.b32.xlu0 %v978, 32
  %v981 = vpop.permute.xlu0 %980
  %v983 = vadd.f32 %v973, %v981
  %v984 = vtanh.pop %v983
  %986 = vrot.lane.b32.xlu0 %v984, 32
  %v987 = vpop.permute.xlu0 %986
  %v989 = vmul.f32 %v971, %v987
  %991 = vrot.lane.b32.xlu0 %v989, 64
  %v992 = vpop.permute.xlu0 %991
  %994 = vst.msk [vmem:[#allocation3 + $0x38] sm:$0xff] %vm186, %v992
  %v995 = vld [vmem:[#allocation3] sm:$0xff]
  %v996 = vld [vmem:[#allocation3 + $0x8] sm:$0xff]
  %v997 = vld [vmem:[#allocation3 + $0x10] sm:$0xff]
  %v998 = vld [vmem:[#allocation3 + $0x18] sm:$0xff]
  %v999 = vld [vmem:[#allocation3 + $0x20] sm:$0xff]
  %v1000 = vld [vmem:[#allocation3 + $0x28] sm:$0xff]
  %v1001 = vld [vmem:[#allocation3 + $0x30] sm:$0xff]
  %v1002 = vld [vmem:[#allocation3 + $0x38] sm:$0xff]
  %v1003 = vld [vmem:[%s4] sm:$0xff]
  %v1004 = vld [vmem:[%s4 + $0x8] sm:$0xff]
  %v1005 = vld [vmem:[%s4 + $0x10] sm:$0xff]
  %v1006 = vld [vmem:[%s4 + $0x18] sm:$0xff]
  %v1007 = vld [vmem:[%s5] sm:$0x1]
  %v1009 = vlaneseq
  %v1010 = vshrl.u32 %v1009, 7
  %v1011 = vsub.s32 0, %v1010
  %v1012 = vrot.slane %v1007, %v1011
  %v1015 = vsel %vm186, %v995, 0
  %v1018 = vsel %vm186, %v996, 0
  %v1021 = vsel %vm186, %v997, 0
  %v1024 = vsel %vm186, %v998, 0
  %v1027 = vsel %vm186, %v999, 0
  %v1030 = vsel %vm186, %v1000, 0
  %v1033 = vsel %vm186, %v1001, 0
  %v1036 = vsel %vm186, %v1002, 0
  %1038 = vmatprep.subr.mxu0 0.0
  %1039 = vmatpush1.msra.mxu0 %v1003
  %1040 = vmatprep.subr.mxu0 0.0
  %1041 = vmatpush1.msra.mxu0 %v1004
  %1042 = vmatprep.subr.mxu0 0.0
  %1043 = vmatpush1.msra.mxu0 %v1005
  %1044 = vmatprep.subr.mxu0 0.0
  %1045 = vmatpush1.msra.mxu0 %v1006
  %1046 = vmatprep.subr.mxu0 0.0
  %1047 = vmatpush1.msra.mxu0 0.0
  %1048 = vmatprep.subr.mxu0 0.0
  %1049 = vmatpush1.msra.mxu0 0.0
  %1050 = vmatprep.subr.mxu0 0.0
  %1051 = vmatpush1.msra.mxu0 0.0
  %1052 = vmatprep.subr.mxu0 0.0
  %1053 = vmatpush1.msra.mxu0 0.0
  %1054 = vmatprep.subr.mxu0 0.0
  %1055 = vmatpush1.msra.mxu0 0.0
  %1056 = vmatprep.subr.mxu0 0.0
  %1057 = vmatpush1.msra.mxu0 0.0
  %1058 = vmatprep.subr.mxu0 0.0
  %1059 = vmatpush1.msra.mxu0 0.0
  %1060 = vmatprep.subr.mxu0 0.0
  %1061 = vmatpush1.msra.mxu0 0.0
  %1062 = vmatprep.subr.mxu0 0.0
  %1063 = vmatpush1.msra.mxu0 0.0
  %1064 = vmatprep.subr.mxu0 0.0
  %1065 = vmatpush1.msra.mxu0 0.0
  %1066 = vmatprep.subr.mxu0 0.0
  %1067 = vmatpush1.msra.mxu0 0.0
  %1068 = vmatprep.subr.mxu0 0.0
  %1069 = vmatpush1.msra.mxu0 0.0
  %1070 = vmatprep.subr.mxu0 0.0
  %1071 = vmatpush1.msra.mxu0 0.0
  %1072 = vmatprep.subr.mxu0 0.0
  %1073 = vmatpush1.msra.mxu0 0.0
  %1074 = vmatprep.subr.mxu0 0.0
  %1075 = vmatpush1.msra.mxu0 0.0
  %1076 = vmatprep.subr.mxu0 0.0
  %1077 = vmatpush1.msra.mxu0 0.0
  %1078 = vmatprep.subr.mxu0 0.0
  %1079 = vmatpush1.msra.mxu0 0.0
  %1080 = vmatprep.subr.mxu0 0.0
  %1081 = vmatpush1.msra.mxu0 0.0
  %1082 = vmatprep.subr.mxu0 0.0
  %1083 = vmatpush1.msra.mxu0 0.0
  %1084 = vmatprep.subr.mxu0 0.0
  %1085 = vmatpush1.msra.mxu0 0.0
  %1086 = vmatprep.subr.mxu0 0.0
  %1087 = vmatpush1.msra.mxu0 0.0
  %1088 = vmatprep.subr.mxu0 0.0
  %1089 = vmatpush1.msra.mxu0 0.0
  %1090 = vmatprep.subr.mxu0 0.0
  %1091 = vmatpush1.msra.mxu0 0.0
  %1092 = vmatprep.subr.mxu0 0.0
  %1093 = vmatpush1.msra.mxu0 0.0
  %1094 = vmatprep.subr.mxu0 0.0
  %1095 = vmatpush1.msra.mxu0 0.0
  %1096 = vmatprep.subr.mxu0 0.0
  %1097 = vmatpush1.msra.mxu0 0.0
  %1098 = vmatprep.subr.mxu0 0.0
  %1099 = vmatpush1.msra.mxu0 0.0
  %1100 = vmatprep.subr.mxu0 0.0
  %1101 = vmatpush1.msra.mxu0 0.0
  %1102 = vmatprep.mubr.f32.mxu0 0.0
  %1103 = vmatmul.mubr.f32.gmra.mrb[0].mxu0 %v1015
  %v1104 = vpop.f32.mrb[0].mxu0
  %v1105 = vadd.f32 %v1012, %v1104
  %v1106 = vpop.f32.mrb[0].mxu0
  %1107 = vmatprep.mubr.f32.mxu0 0.0
  %1108 = vmatmul.mubr.f32.gmra.mrb[0].mxu0 %v1018
  %v1109 = vpop.f32.mrb[0].mxu0
  %v1110 = vadd.f32 %v1012, %v1109
  %v1111 = vpop.f32.mrb[0].mxu0
  %1112 = vmatprep.mubr.f32.mxu0 0.0
  %1113 = vmatmul.mubr.f32.gmra.mrb[0].mxu0 %v1021
  %v1114 = vpop.f32.mrb[0].mxu0
  %v1115 = vadd.f32 %v1012, %v1114
  %v1116 = vpop.f32.mrb[0].mxu0
  %1117 = vmatprep.mubr.f32.mxu0 0.0
  %1118 = vmatmul.mubr.f32.gmra.mrb[0].mxu0 %v1024
  %v1119 = vpop.f32.mrb[0].mxu0
  %v1120 = vadd.f32 %v1012, %v1119
  %v1121 = vpop.f32.mrb[0].mxu0
  %1122 = vmatprep.mubr.f32.mxu0 0.0
  %1123 = vmatmul.mubr.f32.gmra.mrb[0].mxu0 %v1027
  %v1124 = vpop.f32.mrb[0].mxu0
  %v1125 = vadd.f32 %v1012, %v1124
  %v1126 = vpop.f32.mrb[0].mxu0
  %1127 = vmatprep.mubr.f32.mxu0 0.0
  %1128 = vmatmul.mubr.f32.gmra.mrb[0].mxu0 %v1030
  %v1129 = vpop.f32.mrb[0].mxu0
  %v1130 = vadd.f32 %v1012, %v1129
  %v1131 = vpop.f32.mrb[0].mxu0
  %1132 = vmatprep.mubr.f32.mxu0 0.0
  %1133 = vmatmul.mubr.f32.gmra.mrb[0].mxu0 %v1033
  %v1134 = vpop.f32.mrb[0].mxu0
  %v1135 = vadd.f32 %v1012, %v1134
  %v1136 = vpop.f32.mrb[0].mxu0
  %1137 = vmatprep.mubr.f32.mxu0 0.0
  %1138 = vmatmul.mubr.f32.gmra.mrb[0].mxu0 %v1036
  %v1139 = vpop.f32.mrb[0].mxu0
  %v1140 = vadd.f32 %v1012, %v1139
  %v1141 = vpop.f32.mrb[0].mxu0
  %1142 = vdwg.mxu0
  %1143 = vst.msk [vmem:[%s6] sm:$0xff] %vm39, %v1105
  %1144 = vst.msk [vmem:[%s6 + $0x8] sm:$0xff] %vm39, %v1110
  %1145 = vst.msk [vmem:[%s6 + $0x10] sm:$0xff] %vm39, %v1115
  %1146 = vst.msk [vmem:[%s6 + $0x18] sm:$0xff] %vm39, %v1120
  %1147 = vst.msk [vmem:[%s6 + $0x20] sm:$0xff] %vm39, %v1125
  %1148 = vst.msk [vmem:[%s6 + $0x28] sm:$0xff] %vm39, %v1130
  %1149 = vst.msk [vmem:[%s6 + $0x30] sm:$0xff] %vm39, %v1135
  %1150 = vst.msk [vmem:[%s6 + $0x38] sm:$0xff] %vm39, %v1140
  // Predicated region
  $region26: #{lstm_forward.1} parent=0 // pred_check
    _
  $region27: #{lstm_forward.1} parent=0 // pred_check_branch
    %1152 = sbr.rel (0) target = $region29
  $region28: #{lstm_forward.1} parent=0 // pred_region
    _
  $region29: #{lstm_forward.1} parent=0 // pred_fallthru
    _
  // Predicated region
  $region30: #{lstm_forward.1} parent=0 // pred_check
    _
  $region31: #{lstm_forward.1} parent=0 // pred_check_branch
    %1154 = sbr.rel (0) target = $region33
  $region32: #{lstm_forward.1} parent=0 // pred_region
    _
  $region33: #{lstm_forward.1} parent=0 // pred_fallthru
    _

</llo_original>
